<compile_context>
chip_gen: v7x
topology: tpu7x:2x2x1
jax: 0.10.0
libtpu: 0.0.40
codegen_flags: <defaults>
</compile_context>

<pallas_src>
import jax
import jax.numpy as jnp
import numpy as np
from jax.experimental import pallas as pl
from jax.experimental.pallas import tpu as pltpu

LANE = 128
SUBLANE = 8
_MIB = 1024 * 1024

# Padded tables at most this large stay resident in VMEM (one-hot MXU gather).
RESIDENT_TABLE_BYTES = 2 * _MIB
# Bounds the SMEM footprint of the scalar-prefetched ids on the HBM-gather path.
MAX_TOKENS_PER_CALL = 64 * 1024


def _round_up(x, m):
    return ((x + m - 1) // m) * m


# ---------------------------------------------------------------------------
# Path A: small vocabulary -- embedding table resident in VMEM.
# ---------------------------------------------------------------------------
def _ae_resident_kernel(ids_ref,                     # VMEM (tm, 1) int32 token ids (this tile)
                        emb_ref,                     # VMEM (V, Dp)   resident table
                        we_ref, be_ref,              # VMEM (Dp, Hp), (1, Hp)
                        wd_ref, bd_ref,              # VMEM (Hp, Dp), (1, Dp)
                        out_ref):                    # VMEM (tm, Dp) f32
    tm = out_ref.shape[0]
    vocab = emb_ref.shape[0]

    # One-hot gather on the MXU: row selection from the resident table.
    ids = ids_ref[...]                                               # (tm, 1)
    onehot = (ids == jax.lax.broadcasted_iota(jnp.int32, (tm, vocab), 1)
              ).astype(emb_ref.dtype)                                # (tm, V)
    emb = jnp.dot(onehot, emb_ref[...],
                  preferred_element_type=jnp.float32).astype(we_ref.dtype)

    # Encoder (Linear + ReLU) -> decoder (Linear); activation stays in vregs
    # (no (tm, Hp) VMEM round-trip).
    h = jnp.maximum(
        jnp.dot(emb, we_ref[...], preferred_element_type=jnp.float32) + be_ref[...],
        0.0)
    out_ref[...] = (jnp.dot(h.astype(wd_ref.dtype), wd_ref[...],
                            preferred_element_type=jnp.float32) + bd_ref[...]
                    ).astype(out_ref.dtype)


# ---------------------------------------------------------------------------
# Path B: large vocabulary -- per-row HBM gather, double-buffered across steps.
# ---------------------------------------------------------------------------
def _ae_gather_kernel(ids_ref,                       # SMEM (chunk,) int32 (scalar prefetch)
                      emb_hbm,                       # HBM  (V, Dp)
                      we_ref, be_ref,                # VMEM resident weights
                      wd_ref, bd_ref,
                      out_ref,                       # VMEM (tm, Dp) f32
                      emb_buf,                       # VMEM (2*tm, Dp) double buffer
                      sem):                          # DMA sems (2,) -- one per slot
    i = pl.program_id(0)
    nt = pl.num_programs(0)
    tm = out_ref.shape[0]
    slot = i % 2

    def issue_tile_gather(tile, slot_):
        tok0 = tile * tm
        row0 = slot_ * tm

        @pl.loop(0, tm)
        def _(t):
            row = ids_ref[tok0 + t]
            pltpu.make_async_copy(emb_hbm.at[pl.ds(row, 1)],
                                  emb_buf.at[pl.ds(row0 + t, 1)],
                                  sem.at[slot_]).start()

    # Prime the pipeline with the first tile's rows.
    @pl.when(i == 0)
    def _():
        issue_tile_gather(i, slot)

    # Prefetch the NEXT tile's rows into the other slot; they land while this
    # tile's matmuls run (hides the gather latency that pl.ANY inputs expose).
    @pl.when(i + 1 < nt)
    def _():
        issue_tile_gather(i + 1, 1 - slot)

    # Wait for the current tile's rows.  All rows of a slot share one DMA
    # semaphore; each wait uses the true src/dst descriptor for that row.
    tok0 = i * tm
    row0 = slot * tm

    @pl.loop(0, tm)
    def _(t):
        row = ids_ref[tok0 + t]
        pltpu.make_async_copy(emb_hbm.at[pl.ds(row, 1)],
                              emb_buf.at[pl.ds(row0 + t, 1)],
                              sem.at[slot]).wait()

    emb = emb_buf[pl.ds(pl.multiple_of(slot * tm, SUBLANE), tm), :]
    h = jnp.maximum(
        jnp.dot(emb, we_ref[...], preferred_element_type=jnp.float32) + be_ref[...],
        0.0)
    # TODO(synk): for very large Hp, tile the decoder's K dimension instead of
    # one (tm, Hp) x (Hp, Dp) dot to bound vreg pressure.
    out_ref[...] = (jnp.dot(h.astype(wd_ref.dtype), wd_ref[...],
                            preferred_element_type=jnp.float32) + bd_ref[...]
                    ).astype(out_ref.dtype)


# ---------------------------------------------------------------------------
# Wrapper
# ---------------------------------------------------------------------------
def prepare_autoencoder_params(emb_table, w_enc, b_enc, w_dec, b_dec,
                               param_dtype=jnp.float32):
    """One-time padding / casting of parameters (NOT rebuilt per forward call)."""
    V, D = emb_table.shape
    Din, H = w_enc.shape
    assert Din == D and w_dec.shape == (H, D)
    Dp = _round_up(D, LANE)
    Hp = _round_up(H, LANE)

    emb_p = jnp.zeros((V, Dp), param_dtype).at[:, :D].set(emb_table.astype(param_dtype))
    we_p = jnp.zeros((Dp, Hp), param_dtype).at[:D, :H].set(w_enc.astype(param_dtype))
    wd_p = jnp.zeros((Hp, Dp), param_dtype).at[:H, :D].set(w_dec.astype(param_dtype))
    # Biases stay f32 (added to the f32 MXU accumulator).
    be_p = jnp.zeros((1, Hp), jnp.float32).at[0, :H].set(b_enc.astype(jnp.float32))
    bd_p = jnp.zeros((1, Dp), jnp.float32).at[0, :D].set(b_dec.astype(jnp.float32))

    return dict(emb=emb_p, w_enc=we_p, b_enc=be_p, w_dec=wd_p, b_dec=bd_p,
                V=V, D=D, H=H, Dp=Dp, Hp=Hp)


def _vmem_limit_bytes(est_bytes):
    # Budget from actual usage and the chip's VMEM (128 MiB on v5e/v6e, 64 MiB
    # per TensorCore on v7x); leave ~25% headroom below physical.
    try:
        cap = int(pltpu.get_tpu_info().vmem_capacity_bytes)
    except Exception:
        cap = 64 * _MIB
    return int(min(0.75 * cap, max(32 * _MIB, 2 * est_bytes + 8 * _MIB)))


def _forward_resident(ids_padded, params, tm, num_tiles, weight_bytes):
    Np = ids_padded.shape[0]
    V, Dp, Hp = params["V"], params["Dp"], params["Hp"]
    pbytes = params["emb"].dtype.itemsize
    ids_col = ids_padded.reshape(Np, 1)

    est = (2 * (weight_bytes + V * Dp * pbytes + tm * Dp * 4 + tm * 4)
           + tm * V * 4 + tm * Hp * 4)

    return pl.pallas_call(
        _ae_resident_kernel,
        out_shape=jax.ShapeDtypeStruct((Np, Dp), jnp.float32),
        grid=(num_tiles,),
        in_specs=[
            pl.BlockSpec((tm, 1), lambda i: (i, 0)),        # per-tile token ids
            pl.BlockSpec((V, Dp), lambda i: (0, 0)),        # resident table
            pl.BlockSpec((Dp, Hp), lambda i: (0, 0)),       # resident weights
            pl.BlockSpec((1, Hp), lambda i: (0, 0)),
            pl.BlockSpec((Hp, Dp), lambda i: (0, 0)),
            pl.BlockSpec((1, Dp), lambda i: (0, 0)),
        ],
        out_specs=pl.BlockSpec((tm, Dp), lambda i: (i, 0)),
        compiler_params=pltpu.CompilerParams(
            dimension_semantics=("parallel",),              # tiles are independent
            vmem_limit_bytes=_vmem_limit_bytes(est),
        ),
    )(ids_col, params["emb"], params["w_enc"], params["b_enc"],
      params["w_dec"], params["b_dec"])


def _forward_hbm_gather(ids_padded, params, tm, weight_bytes):
    Np = ids_padded.shape[0]
    Dp, Hp = params["Dp"], params["Hp"]
    param_dtype = params["emb"].dtype
    pbytes = param_dtype.itemsize

    est = 2 * (weight_bytes + tm * Dp * 4) + 2 * tm * Dp * pbytes + tm * Hp * 4
    vmem_limit = _vmem_limit_bytes(est)
    chunk = max(tm, (MAX_TOKENS_PER_CALL // tm) * tm)       # multiple of tm

    def call(ids_chunk):
        n_chunk = ids_chunk.shape[0]
        grid_spec = pltpu.PrefetchScalarGridSpec(
            num_scalar_prefetch=1,                          # chunk ids -> SMEM
            grid=(n_chunk // tm,),
            in_specs=[
                pl.BlockSpec(memory_space=pl.ANY),                  # table in HBM
                pl.BlockSpec((Dp, Hp), lambda i, ids: (0, 0)),      # resident weights
                pl.BlockSpec((1, Hp), lambda i, ids: (0, 0)),
                pl.BlockSpec((Hp, Dp), lambda i, ids: (0, 0)),
                pl.BlockSpec((1, Dp), lambda i, ids: (0, 0)),
            ],
            out_specs=pl.BlockSpec((tm, Dp), lambda i, ids: (i, 0)),
            scratch_shapes=[
                pltpu.VMEM((2 * tm, Dp), param_dtype),      # double-buffered rows
                pltpu.SemaphoreType.DMA((2,)),              # one shared sem per slot
            ],
        )
        return pl.pallas_call(
            _ae_gather_kernel,
            out_shape=jax.ShapeDtypeStruct((n_chunk, Dp), jnp.float32),
            grid_spec=grid_spec,
            compiler_params=pltpu.CompilerParams(
                # Gather double-buffer carries DMA state across grid steps, so
                # this axis must run in-order on one core.
                dimension_semantics=("arbitrary",),
                vmem_limit_bytes=vmem_limit,
            ),
        )(ids_chunk, params["emb"], params["w_enc"], params["b_enc"],
          params["w_dec"], params["b_dec"])

    if Np <= chunk:
        return call(ids_padded)
    pieces = [call(ids_padded[s:s + chunk]) for s in range(0, Np, chunk)]
    return jnp.concatenate(pieces, axis=0)


def autoencoder_forward(tokens, params, *, tm=256, force_hbm_gather=False):
    """tokens: (B, S) int -> (B, S, D) float32."""
    B, S = tokens.shape
    V, D = params["V"], params["D"]
    Dp, Hp = params["Dp"], params["Hp"]
    pbytes = params["emb"].dtype.itemsize

    N = B * S
    ids = tokens.reshape(N).astype(jnp.int32)

    # Token tile: as large as requested but never beyond the (8-rounded) token
    # count, and split so the grid has >= 2 steps when N allows (v7x balance).
    tm_eff = _round_up(min(tm, _round_up(N, SUBLANE)), SUBLANE)
    if _round_up(N, tm_eff) // tm_eff < 2 and N > 2 * SUBLANE:
        tm_eff = _round_up(-(-N // 2), SUBLANE)
    Np = _round_up(N, tm_eff)
    num_tiles = Np // tm_eff

    ids_padded = jnp.zeros((Np,), jnp.int32).at[:N].set(ids)   # pad id 0, rows dropped

    weight_bytes = (Dp * Hp + Hp * Dp) * pbytes + (Hp + Dp) * 4
    table_bytes = V * Dp * pbytes
    use_resident = (not force_hbm_gather) and table_bytes <= RESIDENT_TABLE_BYTES

    if use_resident:
        out = _forward_resident(ids_padded, params, tm_eff, num_tiles, weight_bytes)
    else:
        out = _forward_hbm_gather(ids_padded, params, tm_eff, weight_bytes)

    return out[:N, :D].reshape(B, S, D)


def reference_forward(tokens, emb_table, w_enc, b_enc, w_dec, b_dec):
    emb = emb_table[tokens]                              # (B, S, D)
    h = jnp.maximum(emb @ w_enc + b_enc, 0.0)            # (B, S, H)
    return h @ w_dec + b_dec                             # (B, S, D)


if __name__ == "__main__":
    # ---- Test 1: module-spec shapes, f32, small vocab -> resident-table path.
    B, S = 2, 8
    V, D, H = 32, 32, 16
    key = jax.random.PRNGKey(0)
    k_tok, k_emb, k_we, k_be, k_wd, k_bd = jax.random.split(key, 6)
    tokens = jax.random.randint(k_tok, (B, S), 0, V, dtype=jnp.int32)
    emb_table = jax.random.normal(k_emb, (V, D), jnp.float32) * 0.1
    w_enc = jax.random.normal(k_we, (D, H), jnp.float32) * (1.0 / np.sqrt(D))
    b_enc = jax.random.normal(k_be, (H,), jnp.float32) * 0.01
    w_dec = jax.random.normal(k_wd, (H, D), jnp.float32) * (1.0 / np.sqrt(H))
    b_dec = jax.random.normal(k_bd, (D,), jnp.float32) * 0.01

    params = prepare_autoencoder_params(emb_table, w_enc, b_enc, w_dec, b_dec)
    out = jax.block_until_ready(autoencoder_forward(tokens, params))
    ref = reference_forward(tokens, emb_table, w_enc, b_enc, w_dec, b_dec)
    np.testing.assert_allclose(np.asarray(out), np.asarray(ref), rtol=1e-5, atol=1e-5)

    # ---- Test 2: larger vocab/token count, bf16 params, forced HBM-gather path
    # (exercises the double-buffered manual gather, multi-tile grid, padding).
    B2, S2 = 2, 384
    V2, D2, H2 = 1000, 48, 24
    k2 = jax.random.split(jax.random.PRNGKey(1), 6)
    tokens2 = jax.random.randint(k2[0], (B2, S2), 0, V2, dtype=jnp.int32)
    emb2 = jax.random.normal(k2[1], (V2, D2), jnp.float32) * 0.1
    we2 = jax.random.normal(k2[2], (D2, H2), jnp.float32) * (1.0 / np.sqrt(D2))
    be2 = jax.random.normal(k2[3], (H2,), jnp.float32) * 0.01
    wd2 = jax.random.normal(k2[4], (H2, D2), jnp.float32) * (1.0 / np.sqrt(H2))
    bd2 = jax.random.normal(k2[5], (D2,), jnp.float32) * 0.01

    params2 = prepare_autoencoder_params(emb2, we2, be2, wd2, bd2,
                                         param_dtype=jnp.bfloat16)
    out2 = jax.block_until_ready(
        autoencoder_forward(tokens2, params2, tm=256, force_hbm_gather=True))
    rq = lambda a: a.astype(jnp.bfloat16).astype(jnp.float32)   # bf16-rounded reference
    ref2 = reference_forward(tokens2, rq(emb2), rq(we2), be2, rq(wd2), bd2)
    np.testing.assert_allclose(np.asarray(out2), np.asarray(ref2), rtol=5e-2, atol=1e-2)

    print("KERNEL_OK")
</pallas_src>

<mosaic_0001>
module attributes {stable_mosaic.version = 11 : i64} {
  func.func @_ae_resident_kernel(%arg0: i32, %arg1: memref<16x1xi32, #tpu.memory_space<vmem>>, %arg2: memref<32x128xf32, #tpu.memory_space<vmem>>, %arg3: memref<128x128xf32, #tpu.memory_space<vmem>>, %arg4: memref<1x128xf32, #tpu.memory_space<vmem>>, %arg5: memref<128x128xf32, #tpu.memory_space<vmem>>, %arg6: memref<1x128xf32, #tpu.memory_space<vmem>>, %arg7: memref<16x128xf32, #tpu.memory_space<vmem>>) attributes {dimension_semantics = [#tpu.dimension_semantics<parallel>], iteration_bounds = array<i64: 1>, scalar_prefetch = 0 : i64, scratch_operands = 0 : i64, tpu.core_type = #tpu.core_type<tc>, window_params = [{transform_indices = @transform_0, window_bounds = array<i64: 16, 1>}, {pipeline_mode = #tpu.pipeline_mode<synchronous>, transform_indices = @transform_1, window_bounds = array<i64: 32, 128>}, {pipeline_mode = #tpu.pipeline_mode<synchronous>, transform_indices = @transform_2, window_bounds = array<i64: 128, 128>}, {pipeline_mode = #tpu.pipeline_mode<synchronous>, transform_indices = @transform_3, window_bounds = array<i64: 1, 128>}, {pipeline_mode = #tpu.pipeline_mode<synchronous>, transform_indices = @transform_4, window_bounds = array<i64: 128, 128>}, {pipeline_mode = #tpu.pipeline_mode<synchronous>, transform_indices = @transform_5, window_bounds = array<i64: 1, 128>}, {transform_indices = @transform_6, window_bounds = array<i64: 16, 128>}]} {
    %c0 = arith.constant 0 : index
    %c0_0 = arith.constant 0 : index
    %0 = vector.load %arg1[%c0, %c0_0] : memref<16x1xi32, #tpu.memory_space<vmem>>, vector<16x1xi32>
    %1 = tpu.iota {dimensions = array<i32: 1>} : vector<16x32xi32>
    %2 = vector.broadcast %0 : vector<16x1xi32> to vector<16x32xi32>
    %3 = arith.cmpi eq, %2, %1 : vector<16x32xi32>
    %4 = arith.extui %3 : vector<16x32xi1> to vector<16x32xi32>
    %5 = arith.sitofp %4 : vector<16x32xi32> to vector<16x32xf32>
    %c0_1 = arith.constant 0 : index
    %c0_2 = arith.constant 0 : index
    %6 = vector.load %arg2[%c0_1, %c0_2] : memref<32x128xf32, #tpu.memory_space<vmem>>, vector<32x128xf32>
    %cst = arith.constant dense<0.000000e+00> : vector<16x128xf32>
    %7 = tpu.matmul %5, %6, %cst {dimension_numbers = #tpu.dot_dimension_numbers<[1], [0], [0], [1], [0, 0, 1, 1], [], []>} : vector<16x32xf32>, vector<32x128xf32>, vector<16x128xf32> -> vector<16x128xf32>
    %c0_3 = arith.constant 0 : index
    %c0_4 = arith.constant 0 : index
    %8 = vector.load %arg3[%c0_3, %c0_4] : memref<128x128xf32, #tpu.memory_space<vmem>>, vector<128x128xf32>
    %cst_5 = arith.constant dense<0.000000e+00> : vector<16x128xf32>
    %9 = tpu.matmul %7, %8, %cst_5 {dimension_numbers = #tpu.dot_dimension_numbers<[1], [0], [0], [1], [0, 0, 1, 1], [], []>} : vector<16x128xf32>, vector<128x128xf32>, vector<16x128xf32> -> vector<16x128xf32>
    %c0_6 = arith.constant 0 : index
    %c0_7 = arith.constant 0 : index
    %10 = vector.load %arg4[%c0_6, %c0_7] : memref<1x128xf32, #tpu.memory_space<vmem>>, vector<1x128xf32>
    %11 = vector.broadcast %10 : vector<1x128xf32> to vector<16x128xf32>
    %12 = arith.addf %9, %11 : vector<16x128xf32>
    %cst_8 = arith.constant 0.000000e+00 : f32
    %13 = vector.broadcast %cst_8 : f32 to vector<16x128xf32>
    %14 = arith.maximumf %12, %13 : vector<16x128xf32>
    %c0_9 = arith.constant 0 : index
    %c0_10 = arith.constant 0 : index
    %15 = vector.load %arg5[%c0_9, %c0_10] : memref<128x128xf32, #tpu.memory_space<vmem>>, vector<128x128xf32>
    %cst_11 = arith.constant dense<0.000000e+00> : vector<16x128xf32>
    %16 = tpu.matmul %14, %15, %cst_11 {dimension_numbers = #tpu.dot_dimension_numbers<[1], [0], [0], [1], [0, 0, 1, 1], [], []>} : vector<16x128xf32>, vector<128x128xf32>, vector<16x128xf32> -> vector<16x128xf32>
    %c0_12 = arith.constant 0 : index
    %c0_13 = arith.constant 0 : index
    %17 = vector.load %arg6[%c0_12, %c0_13] : memref<1x128xf32, #tpu.memory_space<vmem>>, vector<1x128xf32>
    %18 = vector.broadcast %17 : vector<1x128xf32> to vector<16x128xf32>
    %19 = arith.addf %16, %18 : vector<16x128xf32>
    %c0_14 = arith.constant 0 : index
    %c0_15 = arith.constant 0 : index
    %20 = vector.load %arg7[%c0_14, %c0_15] : memref<16x128xf32, #tpu.memory_space<vmem>>, vector<16x128xf32>
    tpu.vector_store %arg7[%c0_14, %c0_15], %19 {strides = array<i32>} : memref<16x128xf32, #tpu.memory_space<vmem>>, vector<16x128xf32>,
    return
  }
  func.func @transform_0(%arg0: i32) -> (i32, i32) {
    %c0_i32 = arith.constant 0 : i32
    %c0_i32_0 = arith.constant 0 : i32
    return %arg0, %c0_i32 : i32, i32
  }
  func.func @transform_1(%arg0: i32) -> (i32, i32) {
    %c0_i32 = arith.constant 0 : i32
    %c0_i32_0 = arith.constant 0 : i32
    %c0_i32_1 = arith.constant 0 : i32
    return %c0_i32, %c0_i32_0 : i32, i32
  }
  func.func @transform_2(%arg0: i32) -> (i32, i32) {
    %c0_i32 = arith.constant 0 : i32
    %c0_i32_0 = arith.constant 0 : i32
    %c0_i32_1 = arith.constant 0 : i32
    return %c0_i32, %c0_i32_0 : i32, i32
  }
  func.func @transform_3(%arg0: i32) -> (i32, i32) {
    %c0_i32 = arith.constant 0 : i32
    %c0_i32_0 = arith.constant 0 : i32
    %c0_i32_1 = arith.constant 0 : i32
    return %c0_i32, %c0_i32_0 : i32, i32
  }
  func.func @transform_4(%arg0: i32) -> (i32, i32) {
    %c0_i32 = arith.constant 0 : i32
    %c0_i32_0 = arith.constant 0 : i32
    %c0_i32_1 = arith.constant 0 : i32
    return %c0_i32, %c0_i32_0 : i32, i32
  }
  func.func @transform_5(%arg0: i32) -> (i32, i32) {
    %c0_i32 = arith.constant 0 : i32
    %c0_i32_0 = arith.constant 0 : i32
    %c0_i32_1 = arith.constant 0 : i32
    return %c0_i32, %c0_i32_0 : i32, i32
  }
  func.func @transform_6(%arg0: i32) -> (i32, i32) {
    %c0_i32 = arith.constant 0 : i32
    %c0_i32_0 = arith.constant 0 : i32
    return %arg0, %c0_i32 : i32, i32
  }
}

</mosaic_0001>

<llo_original>
// kernel: tpu_custom_call.1
$region0: #{tpu_custom_call.1}
  #allocation0 [shape = 'u32[]', space=smem, size = 0x4, offset = 0x4, fixed_abs, tag = 'smem constant byte address 0x4 - core index']
  #allocation1 [shape = 'u32[144,128]{1,0:T(1,128)}', space=vmem, size = 0x12000, scoped, tag = 'internal scratch']
  %s0 = inlined_call_operand.vmem [shape: s32[16,1], index: 0, kind: input, shape index: {}]
  %s1 = inlined_call_operand.hbm [shape: f32[32,128], index: 1, kind: input, shape index: {}]
  %s2 = inlined_call_operand.hbm [shape: f32[128,128], index: 2, kind: input, shape index: {}]
  %s3 = inlined_call_operand.vmem [shape: f32[1,128], index: 3, kind: input, shape index: {}]
  %s4 = inlined_call_operand.hbm [shape: f32[128,128], index: 4, kind: input, shape index: {}]
  %s5 = inlined_call_operand.vmem [shape: f32[1,128], index: 5, kind: input, shape index: {}]
  %s6 = inlined_call_operand.hbm [shape: f32[16,128], index: 6, kind: output, shape index: {}]
  %s7 = sld [smem:[#allocation0]]
  $region46: #{tpu_custom_call.1} parent=0
    _
  %s9 = ssub.s32 1, %s7
  %s10 = scalar_select 0, %s9, %s7
  $region1: #{tpu_custom_call.1} parent=0
    #allocation2 [shape = 'u8[16384]{0}', space=vmem, size = 0x4000, scoped, tag = 'input window, operand 1, single buffered']
    #allocation3 [shape = 's32[1]{0}', space=sflag, size = 0x4, scoped, tag = 'scoped memory for tpu_custom_call.1']
    #allocation4 [shape = 's32[1]{0}', space=sflag, size = 0x4, scoped, tag = 'scoped memory for tpu_custom_call.1']
    #allocation5 [shape = 'u8[65536]{0}', space=vmem, size = 0x10000, scoped, tag = 'input window, operand 2, single buffered']
    #allocation6 [shape = 's32[1]{0}', space=sflag, size = 0x4, scoped, tag = 'scoped memory for tpu_custom_call.1']
    #allocation7 [shape = 'u8[65536]{0}', space=vmem, size = 0x10000, scoped, tag = 'input window, operand 4, single buffered']
    #allocation8 [shape = 'u8[8192]{0}', space=vmem, size = 0x2000, scoped, tag = 'output window, operand 0, single buffered']
    %11 = vsyncpa [#allocation3], 0
    %12 = vsyncpa [#allocation6], 0
    %13 = vsyncpa [#allocation4], 0
    // Predicated region
    $region2: #{tpu_custom_call.1} parent=1 // pred_check
      _
    $region3: #{tpu_custom_call.1} parent=1 // pred_check_branch
      %15 = sbr.rel (0) target = $region5
    $region4: #{tpu_custom_call.1} parent=1 // pred_region
      _
    $region5: #{tpu_custom_call.1} parent=1 // pred_fallthru
      _
    // Predicated region
    $region6: #{tpu_custom_call.1} parent=1 // pred_check
      _
    $region7: #{tpu_custom_call.1} parent=1 // pred_check_branch
      %17 = sbr.rel (0) target = $region9
    $region8: #{tpu_custom_call.1} parent=1 // pred_region
      %s19 = ssub.s32 512, 512
      %20 = vsyncadd [#allocation3], %s19
      %s21 = sshll.u32 [#allocation2], 4
      %s22 = int_to_ptr.vmem [resolvable:$true] %s21
      %27 = dma.hbm_to_vmem [thread:$0]  %s1, 512, %s22, [#allocation3], 128, 128, 8
    $region9: #{tpu_custom_call.1} parent=1 // pred_fallthru
      _
    // Predicated region
    $region10: #{tpu_custom_call.1} parent=1 // pred_check
      _
    $region11: #{tpu_custom_call.1} parent=1 // pred_check_branch
      %29 = sbr.rel (0) target = $region13
    $region12: #{tpu_custom_call.1} parent=1 // pred_region
      %s31 = ssub.s32 2048, 2048
      %32 = vsyncadd [#allocation6], %s31
      %s33 = sshll.u32 [#allocation5], 4
      %s34 = int_to_ptr.vmem [resolvable:$true] %s33
      %39 = dma.hbm_to_vmem [thread:$0]  %s2, 2048, %s34, [#allocation6], 128, 128, 8
    $region13: #{tpu_custom_call.1} parent=1 // pred_fallthru
      _
    // Predicated region
    $region14: #{tpu_custom_call.1} parent=1 // pred_check
      _
    $region15: #{tpu_custom_call.1} parent=1 // pred_check_branch
      %41 = sbr.rel (0) target = $region17
    $region16: #{tpu_custom_call.1} parent=1 // pred_region
      _
    $region17: #{tpu_custom_call.1} parent=1 // pred_fallthru
      _
    // Predicated region
    $region18: #{tpu_custom_call.1} parent=1 // pred_check
      _
    $region19: #{tpu_custom_call.1} parent=1 // pred_check_branch
      %43 = sbr.rel (0) target = $region21
    $region20: #{tpu_custom_call.1} parent=1 // pred_region
      %s45 = ssub.s32 2048, 2048
      %46 = vsyncadd [#allocation6], %s45
      %s47 = sshll.u32 [#allocation7], 4
      %s48 = int_to_ptr.vmem [resolvable:$true] %s47
      %53 = dma.hbm_to_vmem [thread:$0]  %s4, 2048, %s48, [#allocation6], 128, 128, 8
    $region21: #{tpu_custom_call.1} parent=1 // pred_fallthru
      _
    // Predicated region
    $region22: #{tpu_custom_call.1} parent=1 // pred_check
      _
    $region23: #{tpu_custom_call.1} parent=1 // pred_check_branch
      %55 = sbr.rel (0) target = $region25
    $region24: #{tpu_custom_call.1} parent=1 // pred_region
      _
    $region25: #{tpu_custom_call.1} parent=1 // pred_fallthru
      _
    // Predicated region
    $region26: #{tpu_custom_call.1} parent=1 // pred_check
      _
    $region27: #{tpu_custom_call.1} parent=1 // pred_check_branch
      %57 = sbr.rel (0) target = $region29
    $region28: #{tpu_custom_call.1} parent=1 // pred_region
      %58 = dma.done [#allocation3], 512
    $region29: #{tpu_custom_call.1} parent=1 // pred_fallthru
      _
    // Predicated region
    $region30: #{tpu_custom_call.1} parent=1 // pred_check
      _
    $region31: #{tpu_custom_call.1} parent=1 // pred_check_branch
      %60 = sbr.rel (0) target = $region33
    $region32: #{tpu_custom_call.1} parent=1 // pred_region
      %61 = dma.done [#allocation6], 2048
    $region33: #{tpu_custom_call.1} parent=1 // pred_fallthru
      _
    // Predicated region
    $region34: #{tpu_custom_call.1} parent=1 // pred_check
      _
    $region35: #{tpu_custom_call.1} parent=1 // pred_check_branch
      %63 = sbr.rel (0) target = $region37
    $region36: #{tpu_custom_call.1} parent=1 // pred_region
      %64 = dma.done [#allocation6], 2048
    $region37: #{tpu_custom_call.1} parent=1 // pred_fallthru
      _
    %v65 = vld [vmem:[%s0] sm:$0xff]
    %v66 = vld [vmem:[%s0 + $0x8] sm:$0xff]
    %v67 = vlaneseq
    %v68 = vand.u32 %v67, 127
    %69 = vset.pattern.permute.xlu0 0
    %70 = vperm.xlu0 %69, %v65
    %v71 = vpop.permute.xlu0 %70
    %72 = vset.pattern.permute.xlu0 0
    %73 = vperm.xlu0 %72, %v66
    %v74 = vpop.permute.xlu0 %73
    %vm75 = vcmp.eq.s32.totalorder %v71, %v68
    %vm76 = vcmp.eq.s32.totalorder %v74, %v68
    %v77 = vsel %vm75, 1, 0
    %v78 = vsel %vm76, 1, 0
    %v79 = vcvt.s32.f32 %v77
    %v80 = vcvt.s32.f32 %v78
    %v81 = vld [vmem:[#allocation2] sm:$0xff]
    %v82 = vld [vmem:[#allocation2 + $0x8] sm:$0xff]
    %v83 = vld [vmem:[#allocation2 + $0x10] sm:$0xff]
    %v84 = vld [vmem:[#allocation2 + $0x18] sm:$0xff]
    %vm85 = vcmask 261120
    %v87 = vsel %vm85, %v79, 0
    %v90 = vsel %vm85, %v80, 0
    %92 = vmatprep.subr.mxu0 0.0
    %93 = vmatpush1.msra.mxu0 %v81
    %94 = vmatprep.subr.mxu0 0.0
    %95 = vmatpush1.msra.mxu0 %v82
    %96 = vmatprep.subr.mxu0 0.0
    %97 = vmatpush1.msra.mxu0 %v83
    %98 = vmatprep.subr.mxu0 0.0
    %99 = vmatpush1.msra.mxu0 %v84
    %100 = vmatprep.subr.mxu0 0.0
    %101 = vmatpush1.msra.mxu0 0.0
    %102 = vmatprep.subr.mxu0 0.0
    %103 = vmatpush1.msra.mxu0 0.0
    %104 = vmatprep.subr.mxu0 0.0
    %105 = vmatpush1.msra.mxu0 0.0
    %106 = vmatprep.subr.mxu0 0.0
    %107 = vmatpush1.msra.mxu0 0.0
    %108 = vmatprep.subr.mxu0 0.0
    %109 = vmatpush1.msra.mxu0 0.0
    %110 = vmatprep.subr.mxu0 0.0
    %111 = vmatpush1.msra.mxu0 0.0
    %112 = vmatprep.subr.mxu0 0.0
    %113 = vmatpush1.msra.mxu0 0.0
    %114 = vmatprep.subr.mxu0 0.0
    %115 = vmatpush1.msra.mxu0 0.0
    %116 = vmatprep.subr.mxu0 0.0
    %117 = vmatpush1.msra.mxu0 0.0
    %118 = vmatprep.subr.mxu0 0.0
    %119 = vmatpush1.msra.mxu0 0.0
    %120 = vmatprep.subr.mxu0 0.0
    %121 = vmatpush1.msra.mxu0 0.0
    %122 = vmatprep.subr.mxu0 0.0
    %123 = vmatpush1.msra.mxu0 0.0
    %124 = vmatprep.subr.mxu0 0.0
    %125 = vmatpush1.msra.mxu0 0.0
    %126 = vmatprep.subr.mxu0 0.0
    %127 = vmatpush1.msra.mxu0 0.0
    %128 = vmatprep.subr.mxu0 0.0
    %129 = vmatpush1.msra.mxu0 0.0
    %130 = vmatprep.subr.mxu0 0.0
    %131 = vmatpush1.msra.mxu0 0.0
    %132 = vmatprep.subr.mxu0 0.0
    %133 = vmatpush1.msra.mxu0 0.0
    %134 = vmatprep.subr.mxu0 0.0
    %135 = vmatpush1.msra.mxu0 0.0
    %136 = vmatprep.subr.mxu0 0.0
    %137 = vmatpush1.msra.mxu0 0.0
    %138 = vmatprep.subr.mxu0 0.0
    %139 = vmatpush1.msra.mxu0 0.0
    %140 = vmatprep.subr.mxu0 0.0
    %141 = vmatpush1.msra.mxu0 0.0
    %142 = vmatprep.subr.mxu0 0.0
    %143 = vmatpush1.msra.mxu0 0.0
    %144 = vmatprep.subr.mxu0 0.0
    %145 = vmatpush1.msra.mxu0 0.0
    %146 = vmatprep.subr.mxu0 0.0
    %147 = vmatpush1.msra.mxu0 0.0
    %148 = vmatprep.subr.mxu0 0.0
    %149 = vmatpush1.msra.mxu0 0.0
    %150 = vmatprep.subr.mxu0 0.0
    %151 = vmatpush1.msra.mxu0 0.0
    %152 = vmatprep.subr.mxu0 0.0
    %153 = vmatpush1.msra.mxu0 0.0
    %154 = vmatprep.subr.mxu0 0.0
    %155 = vmatpush1.msra.mxu0 0.0
    %156 = vmatprep.mubr.f32.mxu0 0.0
    %157 = vmatmul.mubr.f32.gmra.mrb[0].mxu0 %v87
    %v158 = vpop.f32.mrb[0].mxu0
    %v159 = vadd.f32 0.0, %v158
    %v160 = vpop.f32.mrb[0].mxu0
    %161 = vmatprep.mubr.f32.mxu0 0.0
    %162 = vmatmul.mubr.f32.gmra.mrb[0].mxu0 %v90
    %v163 = vpop.f32.mrb[0].mxu0
    %v164 = vadd.f32 0.0, %v163
    %v165 = vpop.f32.mrb[0].mxu0
    %166 = vdwg.mxu0
    %v167 = vld [vmem:[#allocation5] sm:$0xff]
    %v168 = vld [vmem:[#allocation5 + $0x8] sm:$0xff]
    %v169 = vld [vmem:[#allocation5 + $0x10] sm:$0xff]
    %v170 = vld [vmem:[#allocation5 + $0x18] sm:$0xff]
    %v171 = vld [vmem:[#allocation5 + $0x20] sm:$0xff]
    %v172 = vld [vmem:[#allocation5 + $0x28] sm:$0xff]
    %v173 = vld [vmem:[#allocation5 + $0x30] sm:$0xff]
    %v174 = vld [vmem:[#allocation5 + $0x38] sm:$0xff]
    %v175 = vld [vmem:[#allocation5 + $0x40] sm:$0xff]
    %v176 = vld [vmem:[#allocation5 + $0x48] sm:$0xff]
    %v177 = vld [vmem:[#allocation5 + $0x50] sm:$0xff]
    %v178 = vld [vmem:[#allocation5 + $0x58] sm:$0xff]
    %v179 = vld [vmem:[#allocation5 + $0x60] sm:$0xff]
    %v180 = vld [vmem:[#allocation5 + $0x68] sm:$0xff]
    %v181 = vld [vmem:[#allocation5 + $0x70] sm:$0xff]
    %v182 = vld [vmem:[#allocation5 + $0x78] sm:$0xff]
    %v183 = vld [vmem:[%s3] sm:$0x1]
    %v185 = vlaneseq
    %v186 = vshrl.u32 %v185, 7
    %v187 = vsub.s32 0, %v186
    %v188 = vrot.slane %v183, %v187
    %190 = vmatprep.subr.mxu0 0.0
    %191 = vmatpush1.msra.mxu0 %v167
    %192 = vmatprep.subr.mxu0 0.0
    %193 = vmatpush1.msra.mxu0 %v168
    %194 = vmatprep.subr.mxu0 0.0
    %195 = vmatpush1.msra.mxu0 %v169
    %196 = vmatprep.subr.mxu0 0.0
    %197 = vmatpush1.msra.mxu0 %v170
    %198 = vmatprep.subr.mxu0 0.0
    %199 = vmatpush1.msra.mxu0 %v171
    %200 = vmatprep.subr.mxu0 0.0
    %201 = vmatpush1.msra.mxu0 %v172
    %202 = vmatprep.subr.mxu0 0.0
    %203 = vmatpush1.msra.mxu0 %v173
    %204 = vmatprep.subr.mxu0 0.0
    %205 = vmatpush1.msra.mxu0 %v174
    %206 = vmatprep.subr.mxu0 0.0
    %207 = vmatpush1.msra.mxu0 %v175
    %208 = vmatprep.subr.mxu0 0.0
    %209 = vmatpush1.msra.mxu0 %v176
    %210 = vmatprep.subr.mxu0 0.0
    %211 = vmatpush1.msra.mxu0 %v177
    %212 = vmatprep.subr.mxu0 0.0
    %213 = vmatpush1.msra.mxu0 %v178
    %214 = vmatprep.subr.mxu0 0.0
    %215 = vmatpush1.msra.mxu0 %v179
    %216 = vmatprep.subr.mxu0 0.0
    %217 = vmatpush1.msra.mxu0 %v180
    %218 = vmatprep.subr.mxu0 0.0
    %219 = vmatpush1.msra.mxu0 %v181
    %220 = vmatprep.subr.mxu0 0.0
    %221 = vmatpush1.msra.mxu0 %v182
    %222 = vmatprep.subr.mxu0 0.0
    %223 = vmatpush1.msra.mxu0 0.0
    %224 = vmatprep.subr.mxu0 0.0
    %225 = vmatpush1.msra.mxu0 0.0
    %226 = vmatprep.subr.mxu0 0.0
    %227 = vmatpush1.msra.mxu0 0.0
    %228 = vmatprep.subr.mxu0 0.0
    %229 = vmatpush1.msra.mxu0 0.0
    %230 = vmatprep.subr.mxu0 0.0
    %231 = vmatpush1.msra.mxu0 0.0
    %232 = vmatprep.subr.mxu0 0.0
    %233 = vmatpush1.msra.mxu0 0.0
    %234 = vmatprep.subr.mxu0 0.0
    %235 = vmatpush1.msra.mxu0 0.0
    %236 = vmatprep.subr.mxu0 0.0
    %237 = vmatpush1.msra.mxu0 0.0
    %238 = vmatprep.subr.mxu0 0.0
    %239 = vmatpush1.msra.mxu0 0.0
    %240 = vmatprep.subr.mxu0 0.0
    %241 = vmatpush1.msra.mxu0 0.0
    %242 = vmatprep.subr.mxu0 0.0
    %243 = vmatpush1.msra.mxu0 0.0
    %244 = vmatprep.subr.mxu0 0.0
    %245 = vmatpush1.msra.mxu0 0.0
    %246 = vmatprep.subr.mxu0 0.0
    %247 = vmatpush1.msra.mxu0 0.0
    %248 = vmatprep.subr.mxu0 0.0
    %249 = vmatpush1.msra.mxu0 0.0
    %250 = vmatprep.subr.mxu0 0.0
    %251 = vmatpush1.msra.mxu0 0.0
    %252 = vmatprep.subr.mxu0 0.0
    %253 = vmatpush1.msra.mxu0 0.0
    %254 = vmatprep.mubr.f32.mxu0 0.0
    %255 = vmatmul.mubr.f32.gmra.mrb[0].mxu0 %v159
    %v256 = vpop.f32.mrb[0].mxu0
    %v257 = vadd.f32 %v188, %v256
    %v258 = vpop.f32.mrb[0].mxu0
    %259 = vmatprep.mubr.f32.mxu0 0.0
    %260 = vmatmul.mubr.f32.gmra.mrb[0].mxu0 %v164
    %v261 = vpop.f32.mrb[0].mxu0
    %v262 = vadd.f32 %v188, %v261
    %v263 = vpop.f32.mrb[0].mxu0
    %264 = vdwg.mxu0
    %v265 = vmax.f32 %v257, 0.0
    %v266 = vmax.f32 %v262, 0.0
    %v267 = vld [vmem:[#allocation7] sm:$0xff]
    %v268 = vld [vmem:[#allocation7 + $0x8] sm:$0xff]
    %v269 = vld [vmem:[#allocation7 + $0x10] sm:$0xff]
    %v270 = vld [vmem:[#allocation7 + $0x18] sm:$0xff]
    %v271 = vld [vmem:[#allocation7 + $0x20] sm:$0xff]
    %v272 = vld [vmem:[#allocation7 + $0x28] sm:$0xff]
    %v273 = vld [vmem:[#allocation7 + $0x30] sm:$0xff]
    %v274 = vld [vmem:[#allocation7 + $0x38] sm:$0xff]
    %v275 = vld [vmem:[#allocation7 + $0x40] sm:$0xff]
    %v276 = vld [vmem:[#allocation7 + $0x48] sm:$0xff]
    %v277 = vld [vmem:[#allocation7 + $0x50] sm:$0xff]
    %v278 = vld [vmem:[#allocation7 + $0x58] sm:$0xff]
    %v279 = vld [vmem:[#allocation7 + $0x60] sm:$0xff]
    %v280 = vld [vmem:[#allocation7 + $0x68] sm:$0xff]
    %v281 = vld [vmem:[#allocation7 + $0x70] sm:$0xff]
    %v282 = vld [vmem:[#allocation7 + $0x78] sm:$0xff]
    %v283 = vld [vmem:[%s5] sm:$0x1]
    %v285 = vlaneseq
    %v286 = vshrl.u32 %v285, 7
    %v287 = vsub.s32 0, %v286
    %v288 = vrot.slane %v283, %v287
    %290 = vmatprep.subr.mxu0 0.0
    %291 = vmatpush1.msra.mxu0 %v267
    %292 = vmatprep.subr.mxu0 0.0
    %293 = vmatpush1.msra.mxu0 %v268
    %294 = vmatprep.subr.mxu0 0.0
    %295 = vmatpush1.msra.mxu0 %v269
    %296 = vmatprep.subr.mxu0 0.0
    %297 = vmatpush1.msra.mxu0 %v270
    %298 = vmatprep.subr.mxu0 0.0
    %299 = vmatpush1.msra.mxu0 %v271
    %300 = vmatprep.subr.mxu0 0.0
    %301 = vmatpush1.msra.mxu0 %v272
    %302 = vmatprep.subr.mxu0 0.0
    %303 = vmatpush1.msra.mxu0 %v273
    %304 = vmatprep.subr.mxu0 0.0
    %305 = vmatpush1.msra.mxu0 %v274
    %306 = vmatprep.subr.mxu0 0.0
    %307 = vmatpush1.msra.mxu0 %v275
    %308 = vmatprep.subr.mxu0 0.0
    %309 = vmatpush1.msra.mxu0 %v276
    %310 = vmatprep.subr.mxu0 0.0
    %311 = vmatpush1.msra.mxu0 %v277
    %312 = vmatprep.subr.mxu0 0.0
    %313 = vmatpush1.msra.mxu0 %v278
    %314 = vmatprep.subr.mxu0 0.0
    %315 = vmatpush1.msra.mxu0 %v279
    %316 = vmatprep.subr.mxu0 0.0
    %317 = vmatpush1.msra.mxu0 %v280
    %318 = vmatprep.subr.mxu0 0.0
    %319 = vmatpush1.msra.mxu0 %v281
    %320 = vmatprep.subr.mxu0 0.0
    %321 = vmatpush1.msra.mxu0 %v282
    %322 = vmatprep.subr.mxu0 0.0
    %323 = vmatpush1.msra.mxu0 0.0
    %324 = vmatprep.subr.mxu0 0.0
    %325 = vmatpush1.msra.mxu0 0.0
    %326 = vmatprep.subr.mxu0 0.0
    %327 = vmatpush1.msra.mxu0 0.0
    %328 = vmatprep.subr.mxu0 0.0
    %329 = vmatpush1.msra.mxu0 0.0
    %330 = vmatprep.subr.mxu0 0.0
    %331 = vmatpush1.msra.mxu0 0.0
    %332 = vmatprep.subr.mxu0 0.0
    %333 = vmatpush1.msra.mxu0 0.0
    %334 = vmatprep.subr.mxu0 0.0
    %335 = vmatpush1.msra.mxu0 0.0
    %336 = vmatprep.subr.mxu0 0.0
    %337 = vmatpush1.msra.mxu0 0.0
    %338 = vmatprep.subr.mxu0 0.0
    %339 = vmatpush1.msra.mxu0 0.0
    %340 = vmatprep.subr.mxu0 0.0
    %341 = vmatpush1.msra.mxu0 0.0
    %342 = vmatprep.subr.mxu0 0.0
    %343 = vmatpush1.msra.mxu0 0.0
    %344 = vmatprep.subr.mxu0 0.0
    %345 = vmatpush1.msra.mxu0 0.0
    %346 = vmatprep.subr.mxu0 0.0
    %347 = vmatpush1.msra.mxu0 0.0
    %348 = vmatprep.subr.mxu0 0.0
    %349 = vmatpush1.msra.mxu0 0.0
    %350 = vmatprep.subr.mxu0 0.0
    %351 = vmatpush1.msra.mxu0 0.0
    %352 = vmatprep.subr.mxu0 0.0
    %353 = vmatpush1.msra.mxu0 0.0
    %354 = vmatprep.mubr.f32.mxu0 0.0
    %355 = vmatmul.mubr.f32.gmra.mrb[0].mxu0 %v265
    %v356 = vpop.f32.mrb[0].mxu0
    %v357 = vadd.f32 %v288, %v356
    %v358 = vpop.f32.mrb[0].mxu0
    %359 = vmatprep.mubr.f32.mxu0 0.0
    %360 = vmatmul.mubr.f32.gmra.mrb[0].mxu0 %v266
    %v361 = vpop.f32.mrb[0].mxu0
    %v362 = vadd.f32 %v288, %v361
    %v363 = vpop.f32.mrb[0].mxu0
    %364 = vdwg.mxu0
    %365 = vst [vmem:[#allocation8] sm:$0xff] %v357
    %366 = vst [vmem:[#allocation8 + $0x8] sm:$0xff] %v362
    // Predicated region
    $region38: #{tpu_custom_call.1} parent=1 // pred_check
      _
    $region39: #{tpu_custom_call.1} parent=1 // pred_check_branch
      %368 = sbr.rel (0) target = $region41
    $region40: #{tpu_custom_call.1} parent=1 // pred_region
      %s370 = ssub.s32 256, 256
      %371 = vsyncadd [#allocation4], %s370
      %s372 = sshll.u32 [#allocation8], 4
      %s373 = int_to_ptr.vmem [resolvable:$true] %s372
      %378 = dma.vmem_to_hbm [thread:$0]  %s373, 256, %s6, [#allocation4], 128, 128, 8
    $region41: #{tpu_custom_call.1} parent=1 // pred_fallthru
      _
    // Predicated region
    $region42: #{tpu_custom_call.1} parent=1 // pred_check
      _
    $region43: #{tpu_custom_call.1} parent=1 // pred_check_branch
      %380 = sbr.rel (0) target = $region45
    $region44: #{tpu_custom_call.1} parent=1 // pred_region
      %381 = dma.done [#allocation4], 256
    $region45: #{tpu_custom_call.1} parent=1 // pred_fallthru
      _
    %382 = vsyncpa [#allocation3], 1
    %383 = vsyncpa [#allocation6], 1
    %384 = vsyncpa [#allocation4], 1

</llo_original>
